<compile_context>
chip_gen: v5e
topology: v5e:2x2
jax: 0.10.0
libtpu: 0.0.40
codegen_flags: <defaults>
</compile_context>

<pallas_src>
import math
import jax
import jax.numpy as jnp
from jax.experimental import pallas as pl
from jax.experimental.pallas import tpu as pltpu

# ------------------------------------------------------------------
# Frozen-lake map list (stand-in for the module-level map_name_list)
# ------------------------------------------------------------------
map_name_list = [
    ["SFFF",
     "FHFH",
     "FFFH",
     "HFFG"],
]

IN_DIM = 16 + 64      # 80
K_PAD = 128           # x / w1 padded to a full lane width (zeros -> no effect)
HID = 128
OUT_DIM = 1


def _round_up(n, m):
    return ((n + m - 1) // m) * m


# ------------------------------------------------------------------
# Pallas kernel: 3x (linear + relu) on the MXU, final layer as a
# VPU multiply + lane reduction. Accumulation is always f32.
# ------------------------------------------------------------------
def qfunc_kernel(x_ref,
                 w1_ref, b1_ref,
                 w2_ref, b2_ref,
                 w3_ref, b3_ref,
                 w4_ref, b4_ref,
                 o_ref):
    wdt = w1_ref.dtype                                        # f32 or bf16

    x = x_ref[...].astype(wdt)                                # (TB, 128)
    h = jnp.dot(x, w1_ref[...], preferred_element_type=jnp.float32) + b1_ref[...]
    h = jnp.maximum(h, 0.0)                                   # (TB, 128) f32

    h = jnp.dot(h.astype(wdt), w2_ref[...], preferred_element_type=jnp.float32) + b2_ref[...]
    h = jnp.maximum(h, 0.0)

    h = jnp.dot(h.astype(wdt), w3_ref[...], preferred_element_type=jnp.float32) + b3_ref[...]
    h = jnp.maximum(h, 0.0)

    # Final 128 -> 1: VPU multiply + lane reduce (no (128,1) MXU pass).
    w4 = w4_ref[...].astype(jnp.float32)                      # (1, 128)
    o_ref[...] = jnp.sum(h * w4, axis=-1, keepdims=True) + b4_ref[0]


# ------------------------------------------------------------------
# One-time parameter preparation (transpose / pad / cast OUT of the hot path)
# ------------------------------------------------------------------
def prepare_params(params, dtype=jnp.float32):
    """params: torch-layout arrays [w1(128,80), b1(128), w2(128,128), b2(128),
    w3(128,128), b3(128), w4(1,128), b4(1)].  Returns kernel-ready arrays."""
    w1, b1, w2, b2, w3, b3, w4, b4 = params
    # Pad K from 80 -> 128 with zeros (mathematically identical).
    w1t = jnp.zeros((K_PAD, HID), jnp.float32).at[:IN_DIM, :].set(w1.T).astype(dtype)
    w2t = w2.T.astype(dtype)                      # (128, 128)
    w3t = w3.T.astype(dtype)                      # (128, 128)
    w4r = w4.reshape(1, HID).astype(dtype)        # (1, 128) row for the VPU reduce
    # Biases stay f32 so bias-add / ReLU stay on the f32 VPU path (v5e-safe).
    b1r = b1.reshape(1, HID).astype(jnp.float32)
    b2r = b2.reshape(1, HID).astype(jnp.float32)
    b3r = b3.reshape(1, HID).astype(jnp.float32)
    b4s = b4.reshape(OUT_DIM).astype(jnp.float32)  # (1,) -> SMEM scalar
    return (w1t, b1r, w2t, b2r, w3t, b3r, w4r, b4s)


# ------------------------------------------------------------------
# Batched forward: x_batch (B, 80) -> (B,)
# ------------------------------------------------------------------
def qfunction_forward_batched(x_batch, prepared, *, block_b=128):
    w1t, b1r, w2t, b2r, w3t, b3r, w4r, b4s = prepared

    B = x_batch.shape[0]
    tb = min(block_b, _round_up(B, 8))            # batch tile (multiple of 8)
    Bp = _round_up(B, tb)

    # Pad batch and lanes (80 -> 128); x kept f32 (tiny DMA), cast in-kernel.
    xp = jnp.zeros((Bp, K_PAD), jnp.float32).at[:B, :IN_DIM].set(
        x_batch.astype(jnp.float32))

    wbytes = (w1t.size + w2t.size + w3t.size + w4r.size) * w1t.dtype.itemsize
    bbytes = (b1r.size + b2r.size + b3r.size + b4s.size) * 4
    flops = 2 * Bp * (K_PAD * HID + HID * HID + HID * HID + HID)
    bytes_accessed = wbytes + bbytes + xp.size * 4 + Bp * 4

    const_spec = lambda a: pl.BlockSpec(a.shape, lambda i: (0,) * a.ndim)

    out = pl.pallas_call(
        qfunc_kernel,
        out_shape=jax.ShapeDtypeStruct((Bp, OUT_DIM), jnp.float32),
        grid=(Bp // tb,),
        in_specs=[
            pl.BlockSpec((tb, K_PAD), lambda i: (i, 0)),          # x tile per step
            const_spec(w1t), const_spec(b1r),                     # weights resident
            const_spec(w2t), const_spec(b2r),
            const_spec(w3t), const_spec(b3r),
            const_spec(w4r),
            pl.BlockSpec(memory_space=pltpu.MemorySpace.SMEM),    # b4 scalar
        ],
        out_specs=pl.BlockSpec((tb, OUT_DIM), lambda i: (i, 0)),
        compiler_params=pltpu.CompilerParams(
            dimension_semantics=("parallel",)),
        cost_estimate=pl.CostEstimate(
            flops=int(flops), transcendentals=0,
            bytes_accessed=int(bytes_accessed)),
    )(xp, w1t, b1r, w2t, b2r, w3t, b3r, w4r, b4s)

    return out[:B, 0]                                             # (B,)


# ------------------------------------------------------------------
# Single-sample forward matching the torch module: (80,) -> (1,)
# ------------------------------------------------------------------
def qfunction_forward(x_vec, prepared):
    out = qfunction_forward_batched(x_vec.reshape(1, IN_DIM), prepared, block_b=8)
    return out.reshape(OUT_DIM)


# ------------------------------------------------------------------
# input_process: flatten map ('H' -> 1.0, else 0.0) and concat action
# (host-side Python string handling, same as the torch module)
# ------------------------------------------------------------------
def input_process(map_index, action):
    map_name = map_name_list[map_index]
    map_vector = []
    for row in map_name:
        for k in row:
            map_vector.append(1.0 if k == 'H' else 0.0)
    map_arr = jnp.asarray(map_vector, dtype=jnp.float32)       # (16,)
    action_reshape = action.reshape(64).astype(jnp.float32)    # (64,)
    return jnp.concatenate((map_arr, action_reshape), axis=0)  # (80,)


# ------------------------------------------------------------------
# Deterministic parameter init (same shapes / distributions as __init__)
# ------------------------------------------------------------------
def init_params(key):
    ks = jax.random.split(key, 4)
    def u(k, shape, fan):
        lim = 1.0 / math.sqrt(fan)
        return jax.random.uniform(k, shape, jnp.float32, -lim, lim)
    w1 = u(ks[0], (HID, IN_DIM), 64)
    b1 = jnp.zeros((HID,), jnp.float32)
    w2 = u(ks[1], (HID, HID), 128)
    b2 = jnp.zeros((HID,), jnp.float32)
    w3 = u(ks[2], (HID, HID), 128)
    b3 = jnp.zeros((HID,), jnp.float32)
    w4 = u(ks[3], (OUT_DIM, HID), 128)
    b4 = jnp.zeros((OUT_DIM,), jnp.float32)
    return [w1, b1, w2, b2, w3, b3, w4, b4]


def reference_forward(x_vec, params):
    w1, b1, w2, b2, w3, b3, w4, b4 = params
    h = jnp.maximum(x_vec @ w1.T + b1, 0.0)
    h = jnp.maximum(h @ w2.T + b2, 0.0)
    h = jnp.maximum(h @ w3.T + b3, 0.0)
    return h @ w4.T + b4


if __name__ == "__main__":
    key = jax.random.PRNGKey(0)
    pkey, akey = jax.random.split(key)

    params = init_params(pkey)

    # Batch of state/action pairs (small demo shapes).
    B = 16
    actions = jax.random.uniform(akey, (B, 16, 4), jnp.float32)
    x_batch = jnp.stack([input_process(0, actions[b]) for b in range(B)])  # (16, 80)

    ref = jax.vmap(lambda xv: reference_forward(xv, params))(x_batch).reshape(B)

    # f32 weight path (exact match with the torch module semantics).
    prepared_f32 = prepare_params(params, jnp.float32)
    out_f32 = jax.block_until_ready(
        qfunction_forward_batched(x_batch, prepared_f32, block_b=8))  # grid=(2,)
    assert out_f32.shape == (B,)
    assert jnp.allclose(out_f32, ref, atol=1e-4, rtol=1e-4), (out_f32, ref)

    # bf16 weight path (v6e/v7x fast path): bf16 matmul inputs, f32 accumulation.
    prepared_bf16 = prepare_params(params, jnp.bfloat16)
    out_bf16 = jax.block_until_ready(
        qfunction_forward_batched(x_batch, prepared_bf16, block_b=8))
    assert jnp.allclose(out_bf16, ref, atol=5e-2, rtol=5e-2), (out_bf16, ref)

    # Single-sample path, matching the original forward() signature: (1,)
    single = jax.block_until_ready(qfunction_forward(x_batch[0], prepared_f32))
    assert single.shape == (1,)
    assert jnp.allclose(single, ref[0], atol=1e-4, rtol=1e-4), (single, ref[0])

    print("KERNEL_OK")
</pallas_src>

<mosaic_0001>
module attributes {stable_mosaic.version = 11 : i64} {
  func.func @qfunc_kernel(%arg0: i32, %arg1: memref<8x128xf32, #tpu.memory_space<vmem>>, %arg2: memref<128x128xf32, #tpu.memory_space<vmem>>, %arg3: memref<1x128xf32, #tpu.memory_space<vmem>>, %arg4: memref<128x128xf32, #tpu.memory_space<vmem>>, %arg5: memref<1x128xf32, #tpu.memory_space<vmem>>, %arg6: memref<128x128xf32, #tpu.memory_space<vmem>>, %arg7: memref<1x128xf32, #tpu.memory_space<vmem>>, %arg8: memref<1x128xf32, #tpu.memory_space<vmem>>, %arg9: memref<1xf32, #tpu.memory_space<smem>>, %arg10: memref<8x1xf32, #tpu.memory_space<vmem>>) attributes {dimension_semantics = [#tpu.dimension_semantics<parallel>], iteration_bounds = array<i64: 2>, scalar_prefetch = 0 : i64, scratch_operands = 0 : i64, tpu.core_type = #tpu.core_type<tc>, window_params = [{transform_indices = @transform_0, window_bounds = array<i64: 8, 128>}, {pipeline_mode = #tpu.pipeline_mode<synchronous>, transform_indices = @transform_1, window_bounds = array<i64: 128, 128>}, {pipeline_mode = #tpu.pipeline_mode<synchronous>, transform_indices = @transform_2, window_bounds = array<i64: 1, 128>}, {pipeline_mode = #tpu.pipeline_mode<synchronous>, transform_indices = @transform_3, window_bounds = array<i64: 128, 128>}, {pipeline_mode = #tpu.pipeline_mode<synchronous>, transform_indices = @transform_4, window_bounds = array<i64: 1, 128>}, {pipeline_mode = #tpu.pipeline_mode<synchronous>, transform_indices = @transform_5, window_bounds = array<i64: 128, 128>}, {pipeline_mode = #tpu.pipeline_mode<synchronous>, transform_indices = @transform_6, window_bounds = array<i64: 1, 128>}, {pipeline_mode = #tpu.pipeline_mode<synchronous>, transform_indices = @transform_7, window_bounds = array<i64: 1, 128>}, {transform_indices = @transform_8, window_bounds = array<i64: 1>}, {transform_indices = @transform_9, window_bounds = array<i64: 8, 1>}]} {
    %c0 = arith.constant 0 : index
    %c0_0 = arith.constant 0 : index
    %0 = vector.load %arg1[%c0, %c0_0] : memref<8x128xf32, #tpu.memory_space<vmem>>, vector<8x128xf32>
    %c0_1 = arith.constant 0 : index
    %c0_2 = arith.constant 0 : index
    %1 = vector.load %arg2[%c0_1, %c0_2] : memref<128x128xf32, #tpu.memory_space<vmem>>, vector<128x128xf32>
    %cst = arith.constant dense<0.000000e+00> : vector<8x128xf32>
    %2 = tpu.matmul %0, %1, %cst {dimension_numbers = #tpu.dot_dimension_numbers<[1], [0], [0], [1], [0, 0, 1, 1], [], []>} : vector<8x128xf32>, vector<128x128xf32>, vector<8x128xf32> -> vector<8x128xf32>
    %c0_3 = arith.constant 0 : index
    %c0_4 = arith.constant 0 : index
    %3 = vector.load %arg3[%c0_3, %c0_4] : memref<1x128xf32, #tpu.memory_space<vmem>>, vector<1x128xf32>
    %4 = vector.broadcast %3 : vector<1x128xf32> to vector<8x128xf32>
    %5 = arith.addf %2, %4 : vector<8x128xf32>
    %cst_5 = arith.constant 0.000000e+00 : f32
    %6 = vector.broadcast %cst_5 : f32 to vector<8x128xf32>
    %7 = arith.maximumf %5, %6 : vector<8x128xf32>
    %c0_6 = arith.constant 0 : index
    %c0_7 = arith.constant 0 : index
    %8 = vector.load %arg4[%c0_6, %c0_7] : memref<128x128xf32, #tpu.memory_space<vmem>>, vector<128x128xf32>
    %cst_8 = arith.constant dense<0.000000e+00> : vector<8x128xf32>
    %9 = tpu.matmul %7, %8, %cst_8 {dimension_numbers = #tpu.dot_dimension_numbers<[1], [0], [0], [1], [0, 0, 1, 1], [], []>} : vector<8x128xf32>, vector<128x128xf32>, vector<8x128xf32> -> vector<8x128xf32>
    %c0_9 = arith.constant 0 : index
    %c0_10 = arith.constant 0 : index
    %10 = vector.load %arg5[%c0_9, %c0_10] : memref<1x128xf32, #tpu.memory_space<vmem>>, vector<1x128xf32>
    %11 = vector.broadcast %10 : vector<1x128xf32> to vector<8x128xf32>
    %12 = arith.addf %9, %11 : vector<8x128xf32>
    %cst_11 = arith.constant 0.000000e+00 : f32
    %13 = vector.broadcast %cst_11 : f32 to vector<8x128xf32>
    %14 = arith.maximumf %12, %13 : vector<8x128xf32>
    %c0_12 = arith.constant 0 : index
    %c0_13 = arith.constant 0 : index
    %15 = vector.load %arg6[%c0_12, %c0_13] : memref<128x128xf32, #tpu.memory_space<vmem>>, vector<128x128xf32>
    %cst_14 = arith.constant dense<0.000000e+00> : vector<8x128xf32>
    %16 = tpu.matmul %14, %15, %cst_14 {dimension_numbers = #tpu.dot_dimension_numbers<[1], [0], [0], [1], [0, 0, 1, 1], [], []>} : vector<8x128xf32>, vector<128x128xf32>, vector<8x128xf32> -> vector<8x128xf32>
    %c0_15 = arith.constant 0 : index
    %c0_16 = arith.constant 0 : index
    %17 = vector.load %arg7[%c0_15, %c0_16] : memref<1x128xf32, #tpu.memory_space<vmem>>, vector<1x128xf32>
    %18 = vector.broadcast %17 : vector<1x128xf32> to vector<8x128xf32>
    %19 = arith.addf %16, %18 : vector<8x128xf32>
    %cst_17 = arith.constant 0.000000e+00 : f32
    %20 = vector.broadcast %cst_17 : f32 to vector<8x128xf32>
    %21 = arith.maximumf %19, %20 : vector<8x128xf32>
    %c0_18 = arith.constant 0 : index
    %c0_19 = arith.constant 0 : index
    %22 = vector.load %arg8[%c0_18, %c0_19] : memref<1x128xf32, #tpu.memory_space<vmem>>, vector<1x128xf32>
    %23 = vector.broadcast %22 : vector<1x128xf32> to vector<8x128xf32>
    %24 = arith.mulf %21, %23 : vector<8x128xf32>
    %cst_20 = arith.constant dense<0.000000e+00> : vector<8xf32>
    %25 = vector.multi_reduction <add>, %24, %cst_20 [1] : vector<8x128xf32> to vector<8xf32>
    %26 = vector.shape_cast %25 : vector<8xf32> to vector<8x1xf32>
    %c0_21 = arith.constant 0 : index
    %27 = memref.load %arg9[%c0_21] : memref<1xf32, #tpu.memory_space<smem>>
    %28 = vector.broadcast %27 : f32 to vector<8x1xf32>
    %29 = arith.addf %26, %28 : vector<8x1xf32>
    %c0_22 = arith.constant 0 : index
    %c0_23 = arith.constant 0 : index
    %30 = vector.load %arg10[%c0_22, %c0_23] : memref<8x1xf32, #tpu.memory_space<vmem>>, vector<8x1xf32>
    tpu.vector_store %arg10[%c0_22, %c0_23], %29 {strides = array<i32>} : memref<8x1xf32, #tpu.memory_space<vmem>>, vector<8x1xf32>,
    return
  }
  func.func @transform_0(%arg0: i32) -> (i32, i32) {
    %c0_i32 = arith.constant 0 : i32
    %c0_i32_0 = arith.constant 0 : i32
    return %arg0, %c0_i32 : i32, i32
  }
  func.func @transform_1(%arg0: i32) -> (i32, i32) {
    %c0_i32 = arith.constant 0 : i32
    %c0_i32_0 = arith.constant 0 : i32
    %c0_i32_1 = arith.constant 0 : i32
    return %c0_i32, %c0_i32_0 : i32, i32
  }
  func.func @transform_2(%arg0: i32) -> (i32, i32) {
    %c0_i32 = arith.constant 0 : i32
    %c0_i32_0 = arith.constant 0 : i32
    %c0_i32_1 = arith.constant 0 : i32
    return %c0_i32, %c0_i32_0 : i32, i32
  }
  func.func @transform_3(%arg0: i32) -> (i32, i32) {
    %c0_i32 = arith.constant 0 : i32
    %c0_i32_0 = arith.constant 0 : i32
    %c0_i32_1 = arith.constant 0 : i32
    return %c0_i32, %c0_i32_0 : i32, i32
  }
  func.func @transform_4(%arg0: i32) -> (i32, i32) {
    %c0_i32 = arith.constant 0 : i32
    %c0_i32_0 = arith.constant 0 : i32
    %c0_i32_1 = arith.constant 0 : i32
    return %c0_i32, %c0_i32_0 : i32, i32
  }
  func.func @transform_5(%arg0: i32) -> (i32, i32) {
    %c0_i32 = arith.constant 0 : i32
    %c0_i32_0 = arith.constant 0 : i32
    %c0_i32_1 = arith.constant 0 : i32
    return %c0_i32, %c0_i32_0 : i32, i32
  }
  func.func @transform_6(%arg0: i32) -> (i32, i32) {
    %c0_i32 = arith.constant 0 : i32
    %c0_i32_0 = arith.constant 0 : i32
    %c0_i32_1 = arith.constant 0 : i32
    return %c0_i32, %c0_i32_0 : i32, i32
  }
  func.func @transform_7(%arg0: i32) -> (i32, i32) {
    %c0_i32 = arith.constant 0 : i32
    %c0_i32_0 = arith.constant 0 : i32
    %c0_i32_1 = arith.constant 0 : i32
    return %c0_i32, %c0_i32_0 : i32, i32
  }
  func.func @transform_8(%arg0: i32) -> i32 {
    %c0_i32 = arith.constant 0 : i32
    %c0_i32_0 = arith.constant 0 : i32
    return %c0_i32 : i32
  }
  func.func @transform_9(%arg0: i32) -> (i32, i32) {
    %c0_i32 = arith.constant 0 : i32
    %c0_i32_0 = arith.constant 0 : i32
    return %arg0, %c0_i32 : i32, i32
  }
}

</mosaic_0001>

<llo_original>
// kernel: tpu_custom_call.1
$region0: #{tpu_custom_call.1}
  #allocation0 [shape = 'u32[]', space=smem, size = 0x4, offset = 0x4, fixed_abs, tag = 'smem constant byte address 0x4 - core index']
  #allocation1 [shape = 'u32[72,128]{1,0:T(1,128)}', space=vmem, size = 0x9000, scoped, tag = 'internal scratch']
  #allocation2 [shape = 'f32[1]{0:T(128)S(6)}', space=smem, size = 0x200, scoped, tag = 'scoped memory for tpu_custom_call.1']
  %s0 = inlined_call_operand.hbm [shape: f32[16,128], index: 0, kind: input, shape index: {}]
  %s1 = inlined_call_operand.hbm [shape: f32[128,128], index: 1, kind: input, shape index: {}]
  %s2 = inlined_call_operand.vmem [shape: f32[1,128], index: 2, kind: input, shape index: {}]
  %s3 = inlined_call_operand.hbm [shape: f32[128,128], index: 3, kind: input, shape index: {}]
  %s4 = inlined_call_operand.vmem [shape: f32[1,128], index: 4, kind: input, shape index: {}]
  %s5 = inlined_call_operand.hbm [shape: f32[128,128], index: 5, kind: input, shape index: {}]
  %s6 = inlined_call_operand.vmem [shape: f32[1,128], index: 6, kind: input, shape index: {}]
  %s7 = inlined_call_operand.vmem [shape: f32[1,128], index: 7, kind: input, shape index: {}]
  %s8 = inlined_call_operand.<no memory space> [shape: f32[1], index: 8, kind: input, shape index: {}]
  %s9 = inlined_call_operand.vmem [shape: f32[16,1], index: 9, kind: output, shape index: {}]
  %s10 = sld [smem:[#allocation0]]
  $region85: #{tpu_custom_call.1} parent=0
    _
  %s12 = ssub.s32 1, %s10
  %s13 = scalar_select 0, %s12, %s10
  %14 = sst [smem:[#allocation2]] %s8
  $region1: #{tpu_custom_call.1} parent=0
    #allocation3 [shape = 'u8[8192]{0}', space=vmem, size = 0x2000, scoped, tag = 'input window, operand 0']
    #allocation4 [shape = 's32[2]{0}', space=sflag, size = 0x8, scoped, tag = 'scoped memory for tpu_custom_call.1']
    #allocation5 [shape = 'u8[65536]{0}', space=vmem, size = 0x10000, scoped, tag = 'input window, operand 1, single buffered']
    #allocation6 [shape = 's32[1]{0}', space=sflag, size = 0x4, scoped, tag = 'scoped memory for tpu_custom_call.1']
    #allocation7 [shape = 'u8[65536]{0}', space=vmem, size = 0x10000, scoped, tag = 'input window, operand 3, single buffered']
    #allocation8 [shape = 'u8[65536]{0}', space=vmem, size = 0x10000, scoped, tag = 'input window, operand 5, single buffered']
    #allocation9 [shape = 's32[1]{0}', space=sflag, size = 0x4, scoped, tag = 'scoped memory for tpu_custom_call.1']
    %15 = vsyncpa [#allocation4], 0
    %s16 = scalar_lea.sflag [#allocation4], 1
    %17 = vsyncpa %s16, 0
    %18 = vsyncpa [#allocation6], 0
    %19 = vsyncpa [#allocation9], 0
    loop: start=0, step=1, limit=4
    $region2: #{tpu_custom_call.1} parent=1 // loop_pre_header
      _
    $region3: #{tpu_custom_call.1} parent=1 // loop_header
      %s21 = sphi 0, %s25
      %p22 = scmp.ge.s32.totalorder %s21, 4
      %s31 = sphi 0, %s33
      %s34 = sphi 0, %s31
      %s35 = sphi 0, %s34
      %s51 = sphi 0, %s35
      %s55 = sphi 0, %s55
      %s57 = sphi 0, %s55
      %s58 = sphi 0, %s57
      %s72 = sphi 0, %s58
      %s76 = sphi 0, %s76
      %s78 = sphi 0, %s76
      %s79 = sphi 0, %s78
      %s93 = sphi 0, %s79
      %s97 = sphi 0, %s97
      %s99 = sphi 0, %s97
      %s100 = sphi 0, %s99
      %s114 = sphi 0, %s100
      %s118 = sphi 0, %s118
      %s120 = sphi 0, %s118
      %s121 = sphi 0, %s120
      %s135 = sphi 0, %s121
      %s139 = sphi 0, %s139
      %s141 = sphi 0, %s139
      %s142 = sphi 0, %s141
      %s156 = sphi 0, %s142
      %s160 = sphi 0, %s160
      %s162 = sphi 0, %s160
      %s163 = sphi 0, %s162
      %s177 = sphi 0, %s163
      %s181 = sphi 0, %s181
      %s183 = sphi 0, %s181
      %s184 = sphi 0, %s183
      %s198 = sphi 0, %s184
      %s202 = sphi 0, %s202
      %s204 = sphi 0, %s202
      %s205 = sphi 0, %s204
      %s219 = sphi 0, %s205
      %s225 = sphi 0, %s227
      %s228 = sphi 0, %s225
      %s229 = sphi 0, %s228
      %s245 = sphi 0, %s229
    $region4: #{tpu_custom_call.1} parent=1 // loop_header_branch
      %24 = sbr.rel (%p22) target = $region8
    $region5: #{tpu_custom_call.1} parent=1 // loop_body
      %s26 = ssub.s32 %s21, 1
      %s27 = ssub.s32 %s21, 2
      %s28 = sadd.s32 %s21, 1
      %s29 = ssub.s32 %s21, %s28
      %p30 = scmp.eq.s32.totalorder %s29, 0
      %s32 = sadd.s32 %s31, 1
      %s33 = scalar_select %p30, %s31, %s32
      %p36 = pneg %p30
      %p37 = scmp.eq.s32.totalorder %s21, 1
      %p38 = por %p36, %p37
      %p39 = scmp.ne.s32.totalorder %s31, %s34
      %p40 = scmp.eq.s32.totalorder %s21, 0
      %p41 = por %p39, %p40
      %p42 = scmp.ne.s32.totalorder %s31, %s34
      %p43 = scmp.eq.s32.totalorder %s26, 1
      %p44 = por %p42, %p43
      %p45 = scmp.ne.s32.totalorder %s34, %s35
      %p46 = scmp.eq.s32.totalorder %s26, 0
      %p47 = por %p45, %p46
      %p48 = scmp.ne.s32.totalorder %s34, %s35
      %p49 = scmp.eq.s32.totalorder %s27, 1
      %p50 = por %p48, %p49
      %p52 = scmp.ne.s32.totalorder %s35, %s51
      %p53 = scmp.eq.s32.totalorder %s27, 0
      %p54 = por %p52, %p53
      %s56 = sadd.s32 %s55, 1
      %p59 = scmp.eq.s32.totalorder %s21, 1
      %p60 = scmp.ne.s32.totalorder %s55, %s57
      %p61 = scmp.eq.s32.totalorder %s21, 0
      %p62 = por %p60, %p61
      %p63 = scmp.ne.s32.totalorder %s55, %s57
      %p64 = scmp.eq.s32.totalorder %s26, 1
      %p65 = por %p63, %p64
      %p66 = scmp.ne.s32.totalorder %s57, %s58
      %p67 = scmp.eq.s32.totalorder %s26, 0
      %p68 = por %p66, %p67
      %p69 = scmp.ne.s32.totalorder %s57, %s58
      %p70 = scmp.eq.s32.totalorder %s27, 1
      %p71 = por %p69, %p70
      %p73 = scmp.ne.s32.totalorder %s58, %s72
      %p74 = scmp.eq.s32.totalorder %s27, 0
      %p75 = por %p73, %p74
      %s77 = sadd.s32 %s76, 1
      %p80 = scmp.eq.s32.totalorder %s21, 1
      %p81 = scmp.ne.s32.totalorder %s76, %s78
      %p82 = scmp.eq.s32.totalorder %s21, 0
      %p83 = por %p81, %p82
      %p84 = scmp.ne.s32.totalorder %s76, %s78
      %p85 = scmp.eq.s32.totalorder %s26, 1
      %p86 = por %p84, %p85
      %p87 = scmp.ne.s32.totalorder %s78, %s79
      %p88 = scmp.eq.s32.totalorder %s26, 0
      %p89 = por %p87, %p88
      %p90 = scmp.ne.s32.totalorder %s78, %s79
      %p91 = scmp.eq.s32.totalorder %s27, 1
      %p92 = por %p90, %p91
      %p94 = scmp.ne.s32.totalorder %s79, %s93
      %p95 = scmp.eq.s32.totalorder %s27, 0
      %p96 = por %p94, %p95
      %s98 = sadd.s32 %s97, 1
      %p101 = scmp.eq.s32.totalorder %s21, 1
      %p102 = scmp.ne.s32.totalorder %s97, %s99
      %p103 = scmp.eq.s32.totalorder %s21, 0
      %p104 = por %p102, %p103
      %p105 = scmp.ne.s32.totalorder %s97, %s99
      %p106 = scmp.eq.s32.totalorder %s26, 1
      %p107 = por %p105, %p106
      %p108 = scmp.ne.s32.totalorder %s99, %s100
      %p109 = scmp.eq.s32.totalorder %s26, 0
      %p110 = por %p108, %p109
      %p111 = scmp.ne.s32.totalorder %s99, %s100
      %p112 = scmp.eq.s32.totalorder %s27, 1
      %p113 = por %p111, %p112
      %p115 = scmp.ne.s32.totalorder %s100, %s114
      %p116 = scmp.eq.s32.totalorder %s27, 0
      %p117 = por %p115, %p116
      %s119 = sadd.s32 %s118, 1
      %p122 = scmp.eq.s32.totalorder %s21, 1
      %p123 = scmp.ne.s32.totalorder %s118, %s120
      %p124 = scmp.eq.s32.totalorder %s21, 0
      %p125 = por %p123, %p124
      %p126 = scmp.ne.s32.totalorder %s118, %s120
      %p127 = scmp.eq.s32.totalorder %s26, 1
      %p128 = por %p126, %p127
      %p129 = scmp.ne.s32.totalorder %s120, %s121
      %p130 = scmp.eq.s32.totalorder %s26, 0
      %p131 = por %p129, %p130
      %p132 = scmp.ne.s32.totalorder %s120, %s121
      %p133 = scmp.eq.s32.totalorder %s27, 1
      %p134 = por %p132, %p133
      %p136 = scmp.ne.s32.totalorder %s121, %s135
      %p137 = scmp.eq.s32.totalorder %s27, 0
      %p138 = por %p136, %p137
      %s140 = sadd.s32 %s139, 1
      %p143 = scmp.eq.s32.totalorder %s21, 1
      %p144 = scmp.ne.s32.totalorder %s139, %s141
      %p145 = scmp.eq.s32.totalorder %s21, 0
      %p146 = por %p144, %p145
      %p147 = scmp.ne.s32.totalorder %s139, %s141
      %p148 = scmp.eq.s32.totalorder %s26, 1
      %p149 = por %p147, %p148
      %p150 = scmp.ne.s32.totalorder %s141, %s142
      %p151 = scmp.eq.s32.totalorder %s26, 0
      %p152 = por %p150, %p151
      %p153 = scmp.ne.s32.totalorder %s141, %s142
      %p154 = scmp.eq.s32.totalorder %s27, 1
      %p155 = por %p153, %p154
      %p157 = scmp.ne.s32.totalorder %s142, %s156
      %p158 = scmp.eq.s32.totalorder %s27, 0
      %p159 = por %p157, %p158
      %s161 = sadd.s32 %s160, 1
      %p164 = scmp.eq.s32.totalorder %s21, 1
      %p165 = scmp.ne.s32.totalorder %s160, %s162
      %p166 = scmp.eq.s32.totalorder %s21, 0
      %p167 = por %p165, %p166
      %p168 = scmp.ne.s32.totalorder %s160, %s162
      %p169 = scmp.eq.s32.totalorder %s26, 1
      %p170 = por %p168, %p169
      %p171 = scmp.ne.s32.totalorder %s162, %s163
      %p172 = scmp.eq.s32.totalorder %s26, 0
      %p173 = por %p171, %p172
      %p174 = scmp.ne.s32.totalorder %s162, %s163
      %p175 = scmp.eq.s32.totalorder %s27, 1
      %p176 = por %p174, %p175
      %p178 = scmp.ne.s32.totalorder %s163, %s177
      %p179 = scmp.eq.s32.totalorder %s27, 0
      %p180 = por %p178, %p179
      %s182 = sadd.s32 %s181, 1
      %p185 = scmp.eq.s32.totalorder %s21, 1
      %p186 = scmp.ne.s32.totalorder %s181, %s183
      %p187 = scmp.eq.s32.totalorder %s21, 0
      %p188 = por %p186, %p187
      %p189 = scmp.ne.s32.totalorder %s181, %s183
      %p190 = scmp.eq.s32.totalorder %s26, 1
      %p191 = por %p189, %p190
      %p192 = scmp.ne.s32.totalorder %s183, %s184
      %p193 = scmp.eq.s32.totalorder %s26, 0
      %p194 = por %p192, %p193
      %p195 = scmp.ne.s32.totalorder %s183, %s184
      %p196 = scmp.eq.s32.totalorder %s27, 1
      %p197 = por %p195, %p196
      %p199 = scmp.ne.s32.totalorder %s184, %s198
      %p200 = scmp.eq.s32.totalorder %s27, 0
      %p201 = por %p199, %p200
      %s203 = sadd.s32 %s202, 1
      %p206 = scmp.eq.s32.totalorder %s21, 1
      %p207 = scmp.ne.s32.totalorder %s202, %s204
      %p208 = scmp.eq.s32.totalorder %s21, 0
      %p209 = por %p207, %p208
      %p210 = scmp.ne.s32.totalorder %s202, %s204
      %p211 = scmp.eq.s32.totalorder %s26, 1
      %p212 = por %p210, %p211
      %p213 = scmp.ne.s32.totalorder %s204, %s205
      %p214 = scmp.eq.s32.totalorder %s26, 0
      %p215 = por %p213, %p214
      %p216 = scmp.ne.s32.totalorder %s204, %s205
      %p217 = scmp.eq.s32.totalorder %s27, 1
      %p218 = por %p216, %p217
      %p220 = scmp.ne.s32.totalorder %s205, %s219
      %p221 = scmp.eq.s32.totalorder %s27, 0
      %p222 = por %p220, %p221
      %s223 = ssub.s32 %s21, %s28
      %p224 = scmp.eq.s32.totalorder %s223, 0
      %s226 = sadd.s32 %s225, 1
      %s227 = scalar_select %p224, %s225, %s226
      %p230 = pneg %p224
      %p231 = scmp.eq.s32.totalorder %s21, 1
      %p232 = por %p230, %p231
      %p233 = scmp.ne.s32.totalorder %s225, %s228
      %p234 = scmp.eq.s32.totalorder %s21, 0
      %p235 = por %p233, %p234
      %p236 = scmp.ne.s32.totalorder %s225, %s228
      %p237 = scmp.eq.s32.totalorder %s26, 1
      %p238 = por %p236, %p237
      %p239 = scmp.ne.s32.totalorder %s228, %s229
      %p240 = scmp.eq.s32.totalorder %s26, 0
      %p241 = por %p239, %p240
      %p242 = scmp.ne.s32.totalorder %s228, %s229
      %p243 = scmp.eq.s32.totalorder %s27, 1
      %p244 = por %p242, %p243
      %p246 = scmp.ne.s32.totalorder %s229, %s245
      %p247 = scmp.eq.s32.totalorder %s27, 0
      %p248 = por %p246, %p247
      %p249 = scmp.le.s32.totalorder 1, %s21
      %p250 = scmp.lt.s32.totalorder %s21, 3
      %p251 = pnand %p249, %p250
      %p252 = pneg %p251
      // Predicated region
      $region9: #{tpu_custom_call.1} parent=5 // pred_check
        _
      $region10: #{tpu_custom_call.1} parent=5 // pred_check_branch
        %254 = sbr.rel (%p251) target = $region12
      $region11: #{tpu_custom_call.1} parent=5 // pred_region
        %s255 = ssub.s32 %s21, 1
        // Predicated region
        $region13: #{tpu_custom_call.1} parent=11 // pred_check
          %p256 = pneg %p68
        $region14: #{tpu_custom_call.1} parent=11 // pred_check_branch
          %258 = sbr.rel (%p256) target = $region16
        $region15: #{tpu_custom_call.1} parent=11 // pred_region
          %260 = vsyncadd [#allocation6], 0
          %s261 = sshll.u32 %s1, 4
          %s262 = int_to_ptr.hbm [resolvable:$true] %s261
          %s263 = sshll.u32 [#allocation5], 4
          %s264 = int_to_ptr.vmem [resolvable:$true] %s263
          %269 = dma.hbm_to_vmem [thread:$0]  %s262, 2048, %s264, [#allocation6], 128, 128, 8
        $region16: #{tpu_custom_call.1} parent=11 // pred_fallthru
          _
        // Predicated region
        $region17: #{tpu_custom_call.1} parent=11 // pred_check
          %p270 = pneg %p89
        $region18: #{tpu_custom_call.1} parent=11 // pred_check_branch
          %272 = sbr.rel (%p270) target = $region20
        $region19: #{tpu_custom_call.1} parent=11 // pred_region
          _
        $region20: #{tpu_custom_call.1} parent=11 // pred_fallthru
          _
        // Predicated region
        $region21: #{tpu_custom_call.1} parent=11 // pred_check
          %p273 = pneg %p110
        $region22: #{tpu_custom_call.1} parent=11 // pred_check_branch
          %275 = sbr.rel (%p273) target = $region24
        $region23: #{tpu_custom_call.1} parent=11 // pred_region
          %277 = vsyncadd [#allocation6], 0
          %s278 = sshll.u32 %s3, 4
          %s279 = int_to_ptr.hbm [resolvable:$true] %s278
          %s280 = sshll.u32 [#allocation7], 4
          %s281 = int_to_ptr.vmem [resolvable:$true] %s280
          %286 = dma.hbm_to_vmem [thread:$0]  %s279, 2048, %s281, [#allocation6], 128, 128, 8
        $region24: #{tpu_custom_call.1} parent=11 // pred_fallthru
          _
        // Predicated region
        $region25: #{tpu_custom_call.1} parent=11 // pred_check
          %p287 = pneg %p131
        $region26: #{tpu_custom_call.1} parent=11 // pred_check_branch
          %289 = sbr.rel (%p287) target = $region28
        $region27: #{tpu_custom_call.1} parent=11 // pred_region
          _
        $region28: #{tpu_custom_call.1} parent=11 // pred_fallthru
          _
        // Predicated region
        $region29: #{tpu_custom_call.1} parent=11 // pred_check
          %p290 = pneg %p152
        $region30: #{tpu_custom_call.1} parent=11 // pred_check_branch
          %292 = sbr.rel (%p290) target = $region32
        $region31: #{tpu_custom_call.1} parent=11 // pred_region
          %294 = vsyncadd [#allocation9], 0
          %s295 = sshll.u32 %s5, 4
          %s296 = int_to_ptr.hbm [resolvable:$true] %s295
          %s297 = sshll.u32 [#allocation8], 4
          %s298 = int_to_ptr.vmem [resolvable:$true] %s297
          %303 = dma.hbm_to_vmem [thread:$0]  %s296, 2048, %s298, [#allocation9], 128, 128, 8
        $region32: #{tpu_custom_call.1} parent=11 // pred_fallthru
          _
        // Predicated region
        $region33: #{tpu_custom_call.1} parent=11 // pred_check
          %p304 = pneg %p173
        $region34: #{tpu_custom_call.1} parent=11 // pred_check_branch
          %306 = sbr.rel (%p304) target = $region36
        $region35: #{tpu_custom_call.1} parent=11 // pred_region
          _
        $region36: #{tpu_custom_call.1} parent=11 // pred_fallthru
          _
        // Predicated region
        $region37: #{tpu_custom_call.1} parent=11 // pred_check
          %p307 = pneg %p194
        $region38: #{tpu_custom_call.1} parent=11 // pred_check_branch
          %309 = sbr.rel (%p307) target = $region40
        $region39: #{tpu_custom_call.1} parent=11 // pred_region
          _
        $region40: #{tpu_custom_call.1} parent=11 // pred_fallthru
          _
        // Predicated region
        $region41: #{tpu_custom_call.1} parent=11 // pred_check
          %p310 = pneg %p215
        $region42: #{tpu_custom_call.1} parent=11 // pred_check_branch
          %312 = sbr.rel (%p310) target = $region44
        $region43: #{tpu_custom_call.1} parent=11 // pred_region
          _
        $region44: #{tpu_custom_call.1} parent=11 // pred_fallthru
          _
      $region12: #{tpu_custom_call.1} parent=5 // pred_fallthru
        _
      %p313 = scmp.lt.s32.totalorder %s21, 2
      // Predicated region
      $region45: #{tpu_custom_call.1} parent=5 // pred_check
        %p314 = pneg %p313
      $region46: #{tpu_custom_call.1} parent=5 // pred_check_branch
        %316 = sbr.rel (%p314) target = $region48
      $region47: #{tpu_custom_call.1} parent=5 // pred_region
        // Predicated region
        $region49: #{tpu_custom_call.1} parent=47 // pred_check
          %p317 = pneg %p41
        $region50: #{tpu_custom_call.1} parent=47 // pred_check_branch
          %319 = sbr.rel (%p317) target = $region52
        $region51: #{tpu_custom_call.1} parent=47 // pred_region
          %s320 = sand.u32 %s31, 1
          %s321 = scalar_lea.sflag [#allocation4], %s320
          %s322 = sand.u32 %s31, 1
          %s323 = smul.addr %s322, 8
          %s324 = scalar_lea.vmem [#allocation3], %s323
          %326 = vsyncadd %s321, 0
          %s327 = smul.addr %s21, 8
          %s328 = scalar_lea.hbm %s0, %s327
          %s330 = sshll.u32 %s328, 4
          %s331 = int_to_ptr.hbm [resolvable:$true] %s330
          %s332 = sshll.u32 %s324, 4
          %s333 = int_to_ptr.vmem [resolvable:$true] %s332
          %335 = dma.hbm_to_vmem [thread:$0]  %s331, 128, %s333, %s321
        $region52: #{tpu_custom_call.1} parent=47 // pred_fallthru
          _
      $region48: #{tpu_custom_call.1} parent=5 // pred_fallthru
        _
      %p336 = scmp.le.s32.totalorder 1, %s21
      %p337 = scmp.lt.s32.totalorder %s21, 3
      %p338 = pnand %p336, %p337
      %p339 = pneg %p338
      // Predicated region
      $region53: #{tpu_custom_call.1} parent=5 // pred_check
        _
      $region54: #{tpu_custom_call.1} parent=5 // pred_check_branch
        %341 = sbr.rel (%p338) target = $region56
      $region55: #{tpu_custom_call.1} parent=5 // pred_region
        %s342 = ssub.s32 %s21, 1
        %s343 = sand.u32 %s34, 1
        %s344 = scalar_lea.sflag [#allocation4], %s343
        %s345 = sand.u32 %s34, 1
        %s346 = smul.addr %s345, 8
        %s347 = scalar_lea.vmem [#allocation3], %s346
        // Predicated region
        $region57: #{tpu_custom_call.1} parent=55 // pred_check
          %p348 = pneg %p47
        $region58: #{tpu_custom_call.1} parent=55 // pred_check_branch
          %350 = sbr.rel (%p348) target = $region60
        $region59: #{tpu_custom_call.1} parent=55 // pred_region
          %352 = dma.done %s344, 128
        $region60: #{tpu_custom_call.1} parent=55 // pred_fallthru
          _
        // Predicated region
        $region61: #{tpu_custom_call.1} parent=55 // pred_check
          %p353 = pneg %p68
        $region62: #{tpu_custom_call.1} parent=55 // pred_check_branch
          %355 = sbr.rel (%p353) target = $region64
        $region63: #{tpu_custom_call.1} parent=55 // pred_region
          %357 = dma.done [#allocation6], 2048
        $region64: #{tpu_custom_call.1} parent=55 // pred_fallthru
          _
        // Predicated region
        $region65: #{tpu_custom_call.1} parent=55 // pred_check
          %p358 = pneg %p110
        $region66: #{tpu_custom_call.1} parent=55 // pred_check_branch
          %360 = sbr.rel (%p358) target = $region68
        $region67: #{tpu_custom_call.1} parent=55 // pred_region
          %362 = dma.done [#allocation6], 2048
        $region68: #{tpu_custom_call.1} parent=55 // pred_fallthru
          _
        // Predicated region
        $region69: #{tpu_custom_call.1} parent=55 // pred_check
          %p363 = pneg %p152
        $region70: #{tpu_custom_call.1} parent=55 // pred_check_branch
          %365 = sbr.rel (%p363) target = $region72
        $region71: #{tpu_custom_call.1} parent=55 // pred_region
          %367 = dma.done [#allocation9], 2048
        $region72: #{tpu_custom_call.1} parent=55 // pred_fallthru
          _
        %s368 = sand.u32 %s34, 1
        %s369 = scalar_lea.sflag [#allocation4], %s368
        %s370 = sand.u32 %s34, 1
        %s371 = smul.addr %s370, 8
        %s372 = scalar_lea.vmem [#allocation3], %s371
        %p373 = pneg %p47
        %p374 = pneg %p44
        %p375 = pneg %p68
        %p376 = pneg %p65
        %p377 = pneg %p89
        %p378 = pneg %p86
        %p379 = pneg %p110
        %p380 = pneg %p107
        %p381 = pneg %p131
        %p382 = pneg %p128
        %p383 = pneg %p152
        %p384 = pneg %p149
        %p385 = pneg %p173
        %p386 = pneg %p170
        %p387 = pneg %p194
        %p388 = pneg %p191
        %p389 = pneg %p215
        %p390 = pneg %p212
        %p391 = pneg %p241
        %p392 = pneg %p238
        %p393 = scmp.lt.s32.totalorder %s26, 1
        %s394 = scalar_select %p393, %s26, 1
        %s395 = smul.addr %s394, 8
        %s396 = scalar_lea.vmem %s9, %s395
        %p397 = scmp.lt.s32.totalorder %s26, 1
        %s398 = scalar_select %p397, %s26, 1
        %s399 = smul.addr %s398, 8
        %s400 = scalar_lea.vmem %s9, %s399
        %v401 = vld [vmem:[%s347] sm:$0xff]
        %v402 = vld [vmem:[#allocation5] sm:$0xff]
        %v403 = vld [vmem:[#allocation5 + $0x8] sm:$0xff]
        %v404 = vld [vmem:[#allocation5 + $0x10] sm:$0xff]
        %v405 = vld [vmem:[#allocation5 + $0x18] sm:$0xff]
        %v406 = vld [vmem:[#allocation5 + $0x20] sm:$0xff]
        %v407 = vld [vmem:[#allocation5 + $0x28] sm:$0xff]
        %v408 = vld [vmem:[#allocation5 + $0x30] sm:$0xff]
        %v409 = vld [vmem:[#allocation5 + $0x38] sm:$0xff]
        %v410 = vld [vmem:[#allocation5 + $0x40] sm:$0xff]
        %v411 = vld [vmem:[#allocation5 + $0x48] sm:$0xff]
        %v412 = vld [vmem:[#allocation5 + $0x50] sm:$0xff]
        %v413 = vld [vmem:[#allocation5 + $0x58] sm:$0xff]
        %v414 = vld [vmem:[#allocation5 + $0x60] sm:$0xff]
        %v415 = vld [vmem:[#allocation5 + $0x68] sm:$0xff]
        %v416 = vld [vmem:[#allocation5 + $0x70] sm:$0xff]
        %v417 = vld [vmem:[#allocation5 + $0x78] sm:$0xff]
        %v418 = vld [vmem:[%s2] sm:$0x1]
        %v420 = vperm.slane %v418, 0
        %422 = vmatpush.msra.mxu0 %v417
        %423 = vmatpush.msra.mxu0 %v416
        %424 = vmatpush.msra.mxu0 %v415
        %425 = vmatpush.msra.mxu0 %v414
        %426 = vmatpush.msra.mxu0 %v413
        %427 = vmatpush.msra.mxu0 %v412
        %428 = vmatpush.msra.mxu0 %v411
        %429 = vmatpush.msra.mxu0 %v410
        %430 = vmatpush.msra.mxu0 %v409
        %431 = vmatpush.msra.mxu0 %v408
        %432 = vmatpush.msra.mxu0 %v407
        %433 = vmatpush.msra.mxu0 %v406
        %434 = vmatpush.msra.mxu0 %v405
        %435 = vmatpush.msra.mxu0 %v404
        %436 = vmatpush.msra.mxu0 %v403
        %437 = vmatpush.msra.mxu0 %v402
        %438 = vmatmul.f32.gmra.mxu0 %v401
        %v439 = vpop.f32.mrf.mxu0
        %v440 = vadd.f32 %v420, %v439
        %441 = vdwg.mxu0
        %v442 = vmax.f32 %v440, 0.0
        %v443 = vld [vmem:[#allocation7] sm:$0xff]
        %v444 = vld [vmem:[#allocation7 + $0x8] sm:$0xff]
        %v445 = vld [vmem:[#allocation7 + $0x10] sm:$0xff]
        %v446 = vld [vmem:[#allocation7 + $0x18] sm:$0xff]
        %v447 = vld [vmem:[#allocation7 + $0x20] sm:$0xff]
        %v448 = vld [vmem:[#allocation7 + $0x28] sm:$0xff]
        %v449 = vld [vmem:[#allocation7 + $0x30] sm:$0xff]
        %v450 = vld [vmem:[#allocation7 + $0x38] sm:$0xff]
        %v451 = vld [vmem:[#allocation7 + $0x40] sm:$0xff]
        %v452 = vld [vmem:[#allocation7 + $0x48] sm:$0xff]
        %v453 = vld [vmem:[#allocation7 + $0x50] sm:$0xff]
        %v454 = vld [vmem:[#allocation7 + $0x58] sm:$0xff]
        %v455 = vld [vmem:[#allocation7 + $0x60] sm:$0xff]
        %v456 = vld [vmem:[#allocation7 + $0x68] sm:$0xff]
        %v457 = vld [vmem:[#allocation7 + $0x70] sm:$0xff]
        %v458 = vld [vmem:[#allocation7 + $0x78] sm:$0xff]
        %v459 = vld [vmem:[%s4] sm:$0x1]
        %v461 = vperm.slane %v459, 0
        %463 = vmatpush.msra.mxu0 %v458
        %464 = vmatpush.msra.mxu0 %v457
        %465 = vmatpush.msra.mxu0 %v456
        %466 = vmatpush.msra.mxu0 %v455
        %467 = vmatpush.msra.mxu0 %v454
        %468 = vmatpush.msra.mxu0 %v453
        %469 = vmatpush.msra.mxu0 %v452
        %470 = vmatpush.msra.mxu0 %v451
        %471 = vmatpush.msra.mxu0 %v450
        %472 = vmatpush.msra.mxu0 %v449
        %473 = vmatpush.msra.mxu0 %v448
        %474 = vmatpush.msra.mxu0 %v447
        %475 = vmatpush.msra.mxu0 %v446
        %476 = vmatpush.msra.mxu0 %v445
        %477 = vmatpush.msra.mxu0 %v444
        %478 = vmatpush.msra.mxu0 %v443
        %479 = vmatmul.f32.gmra.mxu0 %v442
        %v480 = vpop.f32.mrf.mxu0
        %v481 = vadd.f32 %v461, %v480
        %482 = vdwg.mxu0
        %v483 = vmax.f32 %v481, 0.0
        %v484 = vld [vmem:[#allocation8] sm:$0xff]
        %v485 = vld [vmem:[#allocation8 + $0x8] sm:$0xff]
        %v486 = vld [vmem:[#allocation8 + $0x10] sm:$0xff]
        %v487 = vld [vmem:[#allocation8 + $0x18] sm:$0xff]
        %v488 = vld [vmem:[#allocation8 + $0x20] sm:$0xff]
        %v489 = vld [vmem:[#allocation8 + $0x28] sm:$0xff]
        %v490 = vld [vmem:[#allocation8 + $0x30] sm:$0xff]
        %v491 = vld [vmem:[#allocation8 + $0x38] sm:$0xff]
        %v492 = vld [vmem:[#allocation8 + $0x40] sm:$0xff]
        %v493 = vld [vmem:[#allocation8 + $0x48] sm:$0xff]
        %v494 = vld [vmem:[#allocation8 + $0x50] sm:$0xff]
        %v495 = vld [vmem:[#allocation8 + $0x58] sm:$0xff]
        %v496 = vld [vmem:[#allocation8 + $0x60] sm:$0xff]
        %v497 = vld [vmem:[#allocation8 + $0x68] sm:$0xff]
        %v498 = vld [vmem:[#allocation8 + $0x70] sm:$0xff]
        %v499 = vld [vmem:[#allocation8 + $0x78] sm:$0xff]
        %v500 = vld [vmem:[%s6] sm:$0x1]
        %v502 = vperm.slane %v500, 0
        %504 = vmatpush.msra.mxu0 %v499
        %505 = vmatpush.msra.mxu0 %v498
        %506 = vmatpush.msra.mxu0 %v497
        %507 = vmatpush.msra.mxu0 %v496
        %508 = vmatpush.msra.mxu0 %v495
        %509 = vmatpush.msra.mxu0 %v494
        %510 = vmatpush.msra.mxu0 %v493
        %511 = vmatpush.msra.mxu0 %v492
        %512 = vmatpush.msra.mxu0 %v491
        %513 = vmatpush.msra.mxu0 %v490
        %514 = vmatpush.msra.mxu0 %v489
        %515 = vmatpush.msra.mxu0 %v488
        %516 = vmatpush.msra.mxu0 %v487
        %517 = vmatpush.msra.mxu0 %v486
        %518 = vmatpush.msra.mxu0 %v485
        %519 = vmatpush.msra.mxu0 %v484
        %520 = vmatmul.f32.gmra.mxu0 %v483
        %v521 = vpop.f32.mrf.mxu0
        %v522 = vadd.f32 %v502, %v521
        %523 = vdwg.mxu0
        %v524 = vmax.f32 %v522, 0.0
        %v525 = vld [vmem:[%s7] sm:$0x1]
        %v527 = vperm.slane %v525, 0
        %v529 = vmul.f32 %v524, %v527
        %530 = vadd.xlane.f32.xlu0 %v529
        %v531 = vpop.xlane.xlu0 %530
        %s532 = sld [smem:[#allocation2]]
        %v533 = vstv %s532
        %v534 = vadd.f32 %v531, %v533
        %vm535 = vcmask 7168
        %536 = vst.msk [vmem:[%s400] sm:$0xff] %vm535, %v534
        %p537 = scmp.lt.s32.totalorder %s26, 1
        %s538 = scalar_select %p537, %s26, 1
        %s539 = smul.addr %s538, 8
        %s540 = scalar_lea.vmem %s9, %s539
        // Predicated region
        $region73: #{tpu_custom_call.1} parent=55 // pred_check
          %p541 = pneg %p238
        $region74: #{tpu_custom_call.1} parent=55 // pred_check_branch
          %543 = sbr.rel (%p541) target = $region76
        $region75: #{tpu_custom_call.1} parent=55 // pred_region
          _
        $region76: #{tpu_custom_call.1} parent=55 // pred_fallthru
          _
      $region56: #{tpu_custom_call.1} parent=5 // pred_fallthru
        _
      %p544 = scmp.le.s32.totalorder 2, %s21
      // Predicated region
      $region77: #{tpu_custom_call.1} parent=5 // pred_check
        %p545 = pneg %p544
      $region78: #{tpu_custom_call.1} parent=5 // pred_check_branch
        %547 = sbr.rel (%p545) target = $region80
      $region79: #{tpu_custom_call.1} parent=5 // pred_region
        %s548 = ssub.s32 %s21, 2
        // Predicated region
        $region81: #{tpu_custom_call.1} parent=79 // pred_check
          %p549 = pneg %p244
        $region82: #{tpu_custom_call.1} parent=79 // pred_check_branch
          %551 = sbr.rel (%p549) target = $region84
        $region83: #{tpu_custom_call.1} parent=79 // pred_region
          %p552 = scmp.lt.s32.totalorder %s27, 1
          %s553 = scalar_select %p552, %s27, 1
          %s554 = smul.addr %s553, 8
          %s555 = scalar_lea.vmem %s9, %s554
        $region84: #{tpu_custom_call.1} parent=79 // pred_fallthru
          _
      $region80: #{tpu_custom_call.1} parent=5 // pred_fallthru
        _
    $region6: #{tpu_custom_call.1} parent=1 // loop_footer
      %s25 = sadd.s32 1, %s21
    $region7: #{tpu_custom_call.1} parent=1 // loop_footer_branch
      %20 = sbr.rel target = $region3
    $region8: #{tpu_custom_call.1} parent=1 // loop_exit
      _
    %556 = vsyncpa [#allocation4], 1
    %s557 = scalar_lea.sflag [#allocation4], 1
    %558 = vsyncpa %s557, 1
    %559 = vsyncpa [#allocation6], 1
    %560 = vsyncpa [#allocation9], 1

</llo_original>
